<compile_context>
chip_gen: v7x
topology: tpu7x:2x2x1
jax: 0.10.0
libtpu: 0.0.40
codegen_flags: <defaults>
</compile_context>

<pallas_src>
import functools

import jax
import jax.numpy as jnp
from jax.experimental import pallas as pl
from jax.experimental.pallas import tpu as pltpu


def _vmem_capacity_bytes():
    """Per-core VMEM capacity (generation-aware), with a conservative fallback."""
    try:
        return int(pltpu.get_tpu_info().vmem_capacity_bytes)
    except Exception:
        return 64 * 1024 * 1024   # v7x-sized fallback: safe on every generation


def _choose_tiles(n, c_in, c_out, s, payload_budget):
    """Pick (nb, ts, n_sb, s_pad) for blocks of shape (nb, c, ts).

    `payload_budget` bounds ONE copy of (two input blocks + one output block);
    the true VMEM footprint is ~2x that (double buffering) + tiny weights,
    which the caller keeps well under the per-chip vmem limit.
    """
    bytes_per_lane = (2 * c_in + c_out) * 4          # per batch element, per lane
    # Spatial (lane) tile first: as large as the budget allows with nb=1,
    # in multiples of 128 lanes, capped at 4096.
    max_ts = max(128, (payload_budget // bytes_per_lane) // 128 * 128)
    max_ts = min(max_ts, 4096)
    if s <= max_ts:
        ts, n_sb = s, 1                              # full-extent lane block (always legal)
    else:
        n_sb = -(-s // max_ts)
        ts = -(-s // (n_sb * 128)) * 128             # minimize tail padding
        n_sb = -(-s // ts)
    s_pad = ts * n_sb
    # Batch (sublane) tile: grow up to 4 while the payload fits the budget;
    # keep at least 2 grid steps overall (megacore) whenever possible.
    nb = 1
    for cand in (4, 3, 2):
        if n % cand:
            continue
        if cand * ts * bytes_per_lane > payload_budget:
            continue
        if (n // cand) * n_sb < 2 and n * n_sb >= 2:
            continue
        nb = cand
        break
    return nb, ts, n_sb, s_pad


# ---------------------------------------------------------------------------
# Pass 1: partial per-channel sum / sum-of-squares of the two half branches
#   h1 = W1 @ relu(x1),  h2 = W2 @ relu(x2)
# One (c_half, 1) partial per (batch-block, spatial-block) grid point, so both
# grid axes are embarrassingly parallel (no resident accumulator, no RMW).
# ---------------------------------------------------------------------------
def _stats_kernel(x1_ref, x2_ref, w1_ref, w2_ref,
                  s1_ref, q1_ref, s2_ref, q2_ref, *, nb):
    w1 = w1_ref[...]                                 # (c_half, c_in)
    w2 = w2_ref[...]
    c_half = w1.shape[0]
    s1 = jnp.zeros((c_half, 1), jnp.float32)
    q1 = jnp.zeros((c_half, 1), jnp.float32)
    s2 = jnp.zeros((c_half, 1), jnp.float32)
    q2 = jnp.zeros((c_half, 1), jnp.float32)
    for b in range(nb):                              # static unroll, nb <= 4
        a1 = jnp.maximum(x1_ref[b], 0.0)             # (c_in, ts)  relu in-kernel
        a2 = jnp.maximum(x2_ref[b], 0.0)
        h1 = jnp.dot(w1, a1, preferred_element_type=jnp.float32)   # (c_half, ts)
        h2 = jnp.dot(w2, a2, preferred_element_type=jnp.float32)
        s1 = s1 + jnp.sum(h1, axis=1, keepdims=True)
        q1 = q1 + jnp.sum(h1 * h1, axis=1, keepdims=True)
        s2 = s2 + jnp.sum(h2, axis=1, keepdims=True)
        q2 = q2 + jnp.sum(h2 * h2, axis=1, keepdims=True)
    s1_ref[0, 0] = s1
    q1_ref[0, 0] = q1
    s2_ref[0, 0] = s2
    q2_ref[0, 0] = q2


# ---------------------------------------------------------------------------
# Pass 2: recompute the 1x1 convs with BN-scale folded into the weights and
# add the per-channel offset.  The two half results go straight into the
# top / bottom sublane halves of the output block (unmasked when c_half % 8
# == 0; still correct otherwise), so the channel concat never materializes.
# ---------------------------------------------------------------------------
def _apply_kernel(x1_ref, x2_ref, w1_ref, w2_ref, off_ref, y_ref, *, nb, c_half):
    w1 = w1_ref[...]                                 # (c_half, c_in), scale folded in
    w2 = w2_ref[...]
    off = off_ref[...]                               # (c_out, 1) broadcasts along lanes
    off1 = off[:c_half]
    off2 = off[c_half:]
    for b in range(nb):                              # static unroll, nb <= 4
        a1 = jnp.maximum(x1_ref[b], 0.0)
        a2 = jnp.maximum(x2_ref[b], 0.0)
        h1 = jnp.dot(w1, a1, preferred_element_type=jnp.float32) + off1
        h2 = jnp.dot(w2, a2, preferred_element_type=jnp.float32) + off2
        y_ref[b, :c_half] = h1.astype(y_ref.dtype)
        y_ref[b, c_half:] = h2.astype(y_ref.dtype)


def shortcut_forward(x, w1, w2, gamma, beta, stride, eps=1e-5):
    """x: (N, C_in, H, W) f32.  w1/w2: (C_out//2, C_in).  gamma/beta: (C_out,)."""
    n, c_in, hgt, wid = x.shape
    c_half = w1.shape[0]
    c_out = 2 * c_half

    ho = (hgt - 1) // stride + 1
    wo = (wid - 1) // stride + 1
    s = ho * wo

    # Branch subsampling (avg_pool2d with kernel 1 == strided slice).  relu is
    # applied inside the kernels (it commutes with subsampling / zero pad).
    # TODO(synk): these remain XLA strided-slice copies (one extra read of x +
    # ~x/2 written for stride=2).  Folding them into the kernels on NCHW input
    # needs either lane-sparse (W < 128) blocks or an in-kernel lane-compaction
    # gather; both lose to the roofline strided copy here.  Revisit if the
    # producer can hand us channels-last activations.
    x1 = x[:, :, ::stride, ::stride]                 # (n, c_in, ho, wo)
    x2 = x[:, :, 1::stride, 1::stride]               # shifted branch
    ph, pw = ho - x2.shape[2], wo - x2.shape[3]
    if ph or pw:                                     # edge of F.pad(.,(-1,1,-1,1)) is zeros
        x2 = jnp.pad(x2, ((0, 0), (0, 0), (0, ph), (0, pw)))
    x1r = x1.reshape(n, c_in, s)                     # lane-dense; reshape is free
    x2r = x2.reshape(n, c_in, s)

    # Generation-aware tiling / VMEM budgets (double-buffering accounted for).
    vmem_cap = _vmem_capacity_bytes()
    payload_budget = min(max(vmem_cap // 16, 1 << 20), 8 << 20)   # 4 MiB on v7x, 8 MiB on v5e/v6e
    vmem_limit = int(min(vmem_cap // 2, 64 << 20))                # 32 MiB on v7x, 64 MiB otherwise
    nb, ts, n_sb, s_pad = _choose_tiles(n, c_in, c_out, s, payload_budget)
    n_bb = n // nb

    if s_pad > s:
        # Pad lanes to the tile multiple so pass-1 never reads garbage; zeros
        # are BN-neutral (contribute 0 to sum and sum-of-squares).
        pad = ((0, 0), (0, 0), (0, s_pad - s))
        x1r = jnp.pad(x1r, pad)
        x2r = jnp.pad(x2r, pad)

    # ---- pass 1: per-block partial statistics (no h written to HBM) ----
    part_shape = jax.ShapeDtypeStruct((n_bb, n_sb, c_half, 1), jnp.float32)
    part_spec = pl.BlockSpec((1, 1, c_half, 1), lambda i, j: (i, j, 0, 0))
    s1p, q1p, s2p, q2p = pl.pallas_call(
        functools.partial(_stats_kernel, nb=nb),
        out_shape=(part_shape,) * 4,
        grid_spec=pltpu.PrefetchScalarGridSpec(
            num_scalar_prefetch=0,
            grid=(n_bb, n_sb),
            in_specs=[pl.BlockSpec((nb, c_in, ts), lambda i, j: (i, 0, j)),
                      pl.BlockSpec((nb, c_in, ts), lambda i, j: (i, 0, j)),
                      pl.BlockSpec((c_half, c_in), lambda i, j: (0, 0)),
                      pl.BlockSpec((c_half, c_in), lambda i, j: (0, 0))],
            out_specs=(part_spec,) * 4),
        compiler_params=pltpu.CompilerParams(
            dimension_semantics=("parallel", "parallel"),
            vmem_limit_bytes=vmem_limit),
    )(x1r, x2r, w1, w2)

    # ---- tiny glue: combine partials, fold BN into per-half scale/offset ----
    cnt = jnp.float32(n * s)                         # true count (padding added zeros)
    total = jnp.concatenate([jnp.sum(s1p, axis=(0, 1))[:, 0],
                             jnp.sum(s2p, axis=(0, 1))[:, 0]])       # (c_out,)
    total_sq = jnp.concatenate([jnp.sum(q1p, axis=(0, 1))[:, 0],
                                jnp.sum(q2p, axis=(0, 1))[:, 0]])
    mean = total / cnt
    # E[h^2] - mean^2 in a single f32 pass; the clamp guards cancellation.
    # TODO(synk): switch to a Welford-style combine of the per-block partials
    # if this ever runs at very large N*S.
    var = jnp.maximum(total_sq / cnt - mean * mean, 0.0)
    scale = gamma * jax.lax.rsqrt(var + eps)
    offset = beta - mean * scale
    w1s = (w1 * scale[:c_half, None]).astype(jnp.float32)
    w2s = (w2 * scale[c_half:, None]).astype(jnp.float32)
    off_col = offset.reshape(c_out, 1).astype(jnp.float32)

    # ---- pass 2: recompute convs with folded BN, write y (NCHW layout) ----
    y = pl.pallas_call(
        functools.partial(_apply_kernel, nb=nb, c_half=c_half),
        out_shape=jax.ShapeDtypeStruct((n, c_out, s), jnp.float32),
        grid_spec=pltpu.PrefetchScalarGridSpec(
            num_scalar_prefetch=0,
            grid=(n_bb, n_sb),
            in_specs=[pl.BlockSpec((nb, c_in, ts), lambda i, j: (i, 0, j)),
                      pl.BlockSpec((nb, c_in, ts), lambda i, j: (i, 0, j)),
                      pl.BlockSpec((c_half, c_in), lambda i, j: (0, 0)),
                      pl.BlockSpec((c_half, c_in), lambda i, j: (0, 0)),
                      pl.BlockSpec((c_out, 1), lambda i, j: (0, 0))],
            out_specs=pl.BlockSpec((nb, c_out, ts), lambda i, j: (i, 0, j))),
        compiler_params=pltpu.CompilerParams(
            dimension_semantics=("parallel", "parallel"),
            vmem_limit_bytes=vmem_limit),
    )(x1r, x2r, w1s, w2s, off_col)

    return y.reshape(n, c_out, ho, wo)               # already NCHW; reshape is free


# ---------------------------------------------------------------------------
# Pure-JAX reference (mirrors the PyTorch forward, training-mode BN).
# ---------------------------------------------------------------------------
def shortcut_reference(x, w1, w2, gamma, beta, stride, eps=1e-5):
    h = jnp.maximum(x, 0.0)
    h1 = h[:, :, ::stride, ::stride]
    h1 = jnp.einsum('nchw,oc->nohw', h1, w1)
    hp = jnp.pad(h, ((0, 0), (0, 0), (0, 1), (0, 1)))[:, :, 1:, 1:]
    h2 = hp[:, :, ::stride, ::stride]
    h2 = jnp.einsum('nchw,oc->nohw', h2, w2)
    hc = jnp.concatenate([h1, h2], axis=1)
    mean = hc.mean(axis=(0, 2, 3), keepdims=True)
    var = hc.var(axis=(0, 2, 3), keepdims=True)
    g = gamma.reshape(1, -1, 1, 1)
    b = beta.reshape(1, -1, 1, 1)
    return g * (hc - mean) / jnp.sqrt(var + eps) + b


if __name__ == "__main__":
    # Shortcut(in_ch=4, out_ch=8, stride=2), x: (2, 4, 16, 16)
    N, C_IN, H, W = 2, 4, 16, 16
    OUT_CH, STRIDE = 8, 2
    C_HALF = OUT_CH // 2

    key = jax.random.PRNGKey(0)
    kx, k1, k2, kg, kb = jax.random.split(key, 5)

    x = jax.random.normal(kx, (N, C_IN, H, W), dtype=jnp.float32)
    # conv weights: (out_ch//2, in_ch, 1, 1) -> stored as (out_ch//2, in_ch)
    w1 = jax.random.normal(k1, (C_HALF, C_IN), dtype=jnp.float32) * 0.5
    w2 = jax.random.normal(k2, (C_HALF, C_IN), dtype=jnp.float32) * 0.5
    gamma = 1.0 + 0.1 * jax.random.normal(kg, (OUT_CH,), dtype=jnp.float32)
    beta = 0.1 * jax.random.normal(kb, (OUT_CH,), dtype=jnp.float32)

    y = shortcut_forward(x, w1, w2, gamma, beta, STRIDE)
    y = jax.block_until_ready(y)

    y_ref = shortcut_reference(x, w1, w2, gamma, beta, STRIDE)
    assert y.shape == y_ref.shape == (N, OUT_CH, H // STRIDE, W // STRIDE)
    assert jnp.max(jnp.abs(y - y_ref)) < 1e-3, "mismatch vs reference"

    print("KERNEL_OK")
</pallas_src>

<mosaic_0001>
module attributes {stable_mosaic.version = 11 : i64} {
  func.func @_stats_kernel(%arg0: i32, %arg1: i32, %arg2: memref<1x4x64xf32, #tpu.memory_space<vmem>>, %arg3: memref<1x4x64xf32, #tpu.memory_space<vmem>>, %arg4: memref<4x4xf32, #tpu.memory_space<vmem>>, %arg5: memref<4x4xf32, #tpu.memory_space<vmem>>, %arg6: memref<1x1x4x1xf32, #tpu.memory_space<vmem>>, %arg7: memref<1x1x4x1xf32, #tpu.memory_space<vmem>>, %arg8: memref<1x1x4x1xf32, #tpu.memory_space<vmem>>, %arg9: memref<1x1x4x1xf32, #tpu.memory_space<vmem>>) attributes {dimension_semantics = [#tpu.dimension_semantics<parallel>, #tpu.dimension_semantics<parallel>], iteration_bounds = array<i64: 2, 1>, scalar_prefetch = 0 : i64, scratch_operands = 0 : i64, tpu.core_type = #tpu.core_type<tc>, window_params = [{transform_indices = @transform_0, window_bounds = array<i64: 1, 4, 64>}, {transform_indices = @transform_1, window_bounds = array<i64: 1, 4, 64>}, {pipeline_mode = #tpu.pipeline_mode<synchronous>, transform_indices = @transform_2, window_bounds = array<i64: 4, 4>}, {pipeline_mode = #tpu.pipeline_mode<synchronous>, transform_indices = @transform_3, window_bounds = array<i64: 4, 4>}, {transform_indices = @transform_4, window_bounds = array<i64: 1, 1, 4, 1>}, {transform_indices = @transform_5, window_bounds = array<i64: 1, 1, 4, 1>}, {transform_indices = @transform_6, window_bounds = array<i64: 1, 1, 4, 1>}, {transform_indices = @transform_7, window_bounds = array<i64: 1, 1, 4, 1>}]} {
    %c0 = arith.constant 0 : index
    %c0_0 = arith.constant 0 : index
    %0 = vector.load %arg4[%c0, %c0_0] : memref<4x4xf32, #tpu.memory_space<vmem>>, vector<4x4xf32>
    %c0_1 = arith.constant 0 : index
    %c0_2 = arith.constant 0 : index
    %1 = vector.load %arg5[%c0_1, %c0_2] : memref<4x4xf32, #tpu.memory_space<vmem>>, vector<4x4xf32>
    %cst = arith.constant 0.000000e+00 : f32
    %2 = vector.broadcast %cst : f32 to vector<4x1xf32>
    %cst_3 = arith.constant 0.000000e+00 : f32
    %3 = vector.broadcast %cst_3 : f32 to vector<4x1xf32>
    %cst_4 = arith.constant 0.000000e+00 : f32
    %4 = vector.broadcast %cst_4 : f32 to vector<4x1xf32>
    %cst_5 = arith.constant 0.000000e+00 : f32
    %5 = vector.broadcast %cst_5 : f32 to vector<4x1xf32>
    %c0_6 = arith.constant 0 : index
    %c0_7 = arith.constant 0 : index
    %c0_8 = arith.constant 0 : index
    %6 = vector.load %arg2[%c0_6, %c0_7, %c0_8] : memref<1x4x64xf32, #tpu.memory_space<vmem>>, vector<1x4x64xf32>
    %7 = vector.shape_cast %6 : vector<1x4x64xf32> to vector<4x64xf32>
    %cst_9 = arith.constant 0.000000e+00 : f32
    %8 = vector.broadcast %cst_9 : f32 to vector<4x64xf32>
    %9 = arith.maximumf %7, %8 : vector<4x64xf32>
    %c0_10 = arith.constant 0 : index
    %c0_11 = arith.constant 0 : index
    %c0_12 = arith.constant 0 : index
    %10 = vector.load %arg3[%c0_10, %c0_11, %c0_12] : memref<1x4x64xf32, #tpu.memory_space<vmem>>, vector<1x4x64xf32>
    %11 = vector.shape_cast %10 : vector<1x4x64xf32> to vector<4x64xf32>
    %cst_13 = arith.constant 0.000000e+00 : f32
    %12 = vector.broadcast %cst_13 : f32 to vector<4x64xf32>
    %13 = arith.maximumf %11, %12 : vector<4x64xf32>
    %cst_14 = arith.constant dense<0.000000e+00> : vector<4x64xf32>
    %14 = tpu.matmul %0, %9, %cst_14 {dimension_numbers = #tpu.dot_dimension_numbers<[1], [0], [0], [1], [0, 0, 1, 1], [], []>} : vector<4x4xf32>, vector<4x64xf32>, vector<4x64xf32> -> vector<4x64xf32>
    %cst_15 = arith.constant dense<0.000000e+00> : vector<4x64xf32>
    %15 = tpu.matmul %1, %13, %cst_15 {dimension_numbers = #tpu.dot_dimension_numbers<[1], [0], [0], [1], [0, 0, 1, 1], [], []>} : vector<4x4xf32>, vector<4x64xf32>, vector<4x64xf32> -> vector<4x64xf32>
    %cst_16 = arith.constant dense<0.000000e+00> : vector<4xf32>
    %16 = vector.multi_reduction <add>, %14, %cst_16 [1] : vector<4x64xf32> to vector<4xf32>
    %17 = vector.shape_cast %16 : vector<4xf32> to vector<4x1xf32>
    %18 = arith.addf %2, %17 : vector<4x1xf32>
    %19 = arith.mulf %14, %14 : vector<4x64xf32>
    %cst_17 = arith.constant dense<0.000000e+00> : vector<4xf32>
    %20 = vector.multi_reduction <add>, %19, %cst_17 [1] : vector<4x64xf32> to vector<4xf32>
    %21 = vector.shape_cast %20 : vector<4xf32> to vector<4x1xf32>
    %22 = arith.addf %3, %21 : vector<4x1xf32>
    %cst_18 = arith.constant dense<0.000000e+00> : vector<4xf32>
    %23 = vector.multi_reduction <add>, %15, %cst_18 [1] : vector<4x64xf32> to vector<4xf32>
    %24 = vector.shape_cast %23 : vector<4xf32> to vector<4x1xf32>
    %25 = arith.addf %4, %24 : vector<4x1xf32>
    %26 = arith.mulf %15, %15 : vector<4x64xf32>
    %cst_19 = arith.constant dense<0.000000e+00> : vector<4xf32>
    %27 = vector.multi_reduction <add>, %26, %cst_19 [1] : vector<4x64xf32> to vector<4xf32>
    %28 = vector.shape_cast %27 : vector<4xf32> to vector<4x1xf32>
    %29 = arith.addf %5, %28 : vector<4x1xf32>
    %c0_20 = arith.constant 0 : index
    %c0_21 = arith.constant 0 : index
    %c0_22 = arith.constant 0 : index
    %c0_23 = arith.constant 0 : index
    %30 = vector.load %arg6[%c0_20, %c0_21, %c0_22, %c0_23] : memref<1x1x4x1xf32, #tpu.memory_space<vmem>>, vector<1x1x4x1xf32>
    %31 = vector.shape_cast %30 : vector<1x1x4x1xf32> to vector<4x1xf32>
    %32 = vector.shape_cast %18 : vector<4x1xf32> to vector<1x1x4x1xf32>
    tpu.vector_store %arg6[%c0_20, %c0_21, %c0_22, %c0_23], %32 {strides = array<i32>} : memref<1x1x4x1xf32, #tpu.memory_space<vmem>>, vector<1x1x4x1xf32>,
    %c0_24 = arith.constant 0 : index
    %c0_25 = arith.constant 0 : index
    %c0_26 = arith.constant 0 : index
    %c0_27 = arith.constant 0 : index
    %33 = vector.load %arg7[%c0_24, %c0_25, %c0_26, %c0_27] : memref<1x1x4x1xf32, #tpu.memory_space<vmem>>, vector<1x1x4x1xf32>
    %34 = vector.shape_cast %33 : vector<1x1x4x1xf32> to vector<4x1xf32>
    %35 = vector.shape_cast %22 : vector<4x1xf32> to vector<1x1x4x1xf32>
    tpu.vector_store %arg7[%c0_24, %c0_25, %c0_26, %c0_27], %35 {strides = array<i32>} : memref<1x1x4x1xf32, #tpu.memory_space<vmem>>, vector<1x1x4x1xf32>,
    %c0_28 = arith.constant 0 : index
    %c0_29 = arith.constant 0 : index
    %c0_30 = arith.constant 0 : index
    %c0_31 = arith.constant 0 : index
    %36 = vector.load %arg8[%c0_28, %c0_29, %c0_30, %c0_31] : memref<1x1x4x1xf32, #tpu.memory_space<vmem>>, vector<1x1x4x1xf32>
    %37 = vector.shape_cast %36 : vector<1x1x4x1xf32> to vector<4x1xf32>
    %38 = vector.shape_cast %25 : vector<4x1xf32> to vector<1x1x4x1xf32>
    tpu.vector_store %arg8[%c0_28, %c0_29, %c0_30, %c0_31], %38 {strides = array<i32>} : memref<1x1x4x1xf32, #tpu.memory_space<vmem>>, vector<1x1x4x1xf32>,
    %c0_32 = arith.constant 0 : index
    %c0_33 = arith.constant 0 : index
    %c0_34 = arith.constant 0 : index
    %c0_35 = arith.constant 0 : index
    %39 = vector.load %arg9[%c0_32, %c0_33, %c0_34, %c0_35] : memref<1x1x4x1xf32, #tpu.memory_space<vmem>>, vector<1x1x4x1xf32>
    %40 = vector.shape_cast %39 : vector<1x1x4x1xf32> to vector<4x1xf32>
    %41 = vector.shape_cast %29 : vector<4x1xf32> to vector<1x1x4x1xf32>
    tpu.vector_store %arg9[%c0_32, %c0_33, %c0_34, %c0_35], %41 {strides = array<i32>} : memref<1x1x4x1xf32, #tpu.memory_space<vmem>>, vector<1x1x4x1xf32>,
    return
  }
  func.func @transform_0(%arg0: i32, %arg1: i32) -> (i32, i32, i32) {
    %c0_i32 = arith.constant 0 : i32
    %c0_i32_0 = arith.constant 0 : i32
    return %arg0, %c0_i32, %arg1 : i32, i32, i32
  }
  func.func @transform_1(%arg0: i32, %arg1: i32) -> (i32, i32, i32) {
    %c0_i32 = arith.constant 0 : i32
    %c0_i32_0 = arith.constant 0 : i32
    return %arg0, %c0_i32, %arg1 : i32, i32, i32
  }
  func.func @transform_2(%arg0: i32, %arg1: i32) -> (i32, i32) {
    %c0_i32 = arith.constant 0 : i32
    %c0_i32_0 = arith.constant 0 : i32
    %c0_i32_1 = arith.constant 0 : i32
    return %c0_i32, %c0_i32_0 : i32, i32
  }
  func.func @transform_3(%arg0: i32, %arg1: i32) -> (i32, i32) {
    %c0_i32 = arith.constant 0 : i32
    %c0_i32_0 = arith.constant 0 : i32
    %c0_i32_1 = arith.constant 0 : i32
    return %c0_i32, %c0_i32_0 : i32, i32
  }
  func.func @transform_4(%arg0: i32, %arg1: i32) -> (i32, i32, i32, i32) {
    %c0_i32 = arith.constant 0 : i32
    %c0_i32_0 = arith.constant 0 : i32
    %c0_i32_1 = arith.constant 0 : i32
    return %arg0, %arg1, %c0_i32, %c0_i32_0 : i32, i32, i32, i32
  }
  func.func @transform_5(%arg0: i32, %arg1: i32) -> (i32, i32, i32, i32) {
    %c0_i32 = arith.constant 0 : i32
    %c0_i32_0 = arith.constant 0 : i32
    %c0_i32_1 = arith.constant 0 : i32
    return %arg0, %arg1, %c0_i32, %c0_i32_0 : i32, i32, i32, i32
  }
  func.func @transform_6(%arg0: i32, %arg1: i32) -> (i32, i32, i32, i32) {
    %c0_i32 = arith.constant 0 : i32
    %c0_i32_0 = arith.constant 0 : i32
    %c0_i32_1 = arith.constant 0 : i32
    return %arg0, %arg1, %c0_i32, %c0_i32_0 : i32, i32, i32, i32
  }
  func.func @transform_7(%arg0: i32, %arg1: i32) -> (i32, i32, i32, i32) {
    %c0_i32 = arith.constant 0 : i32
    %c0_i32_0 = arith.constant 0 : i32
    %c0_i32_1 = arith.constant 0 : i32
    return %arg0, %arg1, %c0_i32, %c0_i32_0 : i32, i32, i32, i32
  }
}

</mosaic_0001>

<llo_original>
// kernel: tpu_custom_call.1
$region0: #{tpu_custom_call.1}
  #allocation0 [shape = 'u32[]', space=smem, size = 0x4, offset = 0x4, fixed_abs, tag = 'smem constant byte address 0x4 - core index']
  #allocation1 [shape = 'u32[144,128]{1,0:T(1,128)}', space=vmem, size = 0x12000, scoped, tag = 'internal scratch']
  %s0 = inlined_call_operand.hbm [shape: f32[2,4,64], index: 0, kind: input, shape index: {}]
  %s1 = inlined_call_operand.hbm [shape: f32[2,4,64], index: 1, kind: input, shape index: {}]
  %s2 = inlined_call_operand.vmem [shape: f32[4,4], index: 2, kind: input, shape index: {}]
  %s3 = inlined_call_operand.vmem [shape: f32[4,4], index: 3, kind: input, shape index: {}]
  %s4 = inlined_call_operand.vmem [shape: f32[2,1,4,1], index: 4, kind: output, shape index: {0}]
  %s5 = inlined_call_operand.vmem [shape: f32[2,1,4,1], index: 5, kind: output, shape index: {1}]
  %s6 = inlined_call_operand.vmem [shape: f32[2,1,4,1], index: 6, kind: output, shape index: {2}]
  %s7 = inlined_call_operand.vmem [shape: f32[2,1,4,1], index: 7, kind: output, shape index: {3}]
  %8 = xla_tuple %s4, %s5, %s6, %s7
  %s9 = sld [smem:[#allocation0]]
  $region81: #{tpu_custom_call.1} parent=0
    _
  %s11 = ssub.s32 1, %s9
  %s12 = scalar_select 0, %s11, %s9
  $region1: #{tpu_custom_call.1} parent=0
    #allocation2 [shape = 'u8[4096]{0}', space=vmem, size = 0x1000, scoped, tag = 'input window, operand 0']
    #allocation3 [shape = 's32[2]{0}', space=sflag, size = 0x8, scoped, tag = 'scoped memory for tpu_custom_call.1']
    #allocation4 [shape = 'u8[4096]{0}', space=vmem, size = 0x1000, scoped, tag = 'input window, operand 1']
    #allocation5 [shape = 's32[2]{0}', space=sflag, size = 0x8, scoped, tag = 'scoped memory for tpu_custom_call.1']
    %13 = vsyncpa [#allocation3], 0
    %s14 = scalar_lea.sflag [#allocation3], 1
    %15 = vsyncpa %s14, 0
    %16 = vsyncpa [#allocation5], 0
    %s17 = scalar_lea.sflag [#allocation5], 1
    %18 = vsyncpa %s17, 0
    loop: start=0, step=1, limit=4
    $region2: #{tpu_custom_call.1} parent=1 // loop_pre_header
      _
    $region3: #{tpu_custom_call.1} parent=1 // loop_header
      %s20 = sphi 0, %s24
      %p21 = scmp.ge.s32.totalorder %s20, 4
      %s27 = sphi 0, %s39
      %s28 = sphi 0, %s35
      %s29 = sphi 0, %s27
      %s30 = sphi 0, %s28
      %s31 = sphi 0, %s29
      %s32 = sphi 0, %s30
      %s44 = sphi 0, %s46
      %s47 = sphi 0, %s44
      %s48 = sphi 0, %s47
      %s64 = sphi 0, %s48
      %s72 = sphi 0, %s74
      %s75 = sphi 0, %s72
      %s76 = sphi 0, %s75
      %s92 = sphi 0, %s76
      %s96 = sphi 0, %s96
      %s98 = sphi 0, %s96
      %s99 = sphi 0, %s98
      %s113 = sphi 0, %s99
      %s117 = sphi 0, %s117
      %s119 = sphi 0, %s117
      %s120 = sphi 0, %s119
      %s134 = sphi 0, %s120
      %s142 = sphi 0, %s144
      %s145 = sphi 0, %s142
      %s146 = sphi 0, %s145
      %s162 = sphi 0, %s146
      %s170 = sphi 0, %s172
      %s173 = sphi 0, %s170
      %s174 = sphi 0, %s173
      %s190 = sphi 0, %s174
      %s198 = sphi 0, %s200
      %s201 = sphi 0, %s198
      %s202 = sphi 0, %s201
      %s218 = sphi 0, %s202
      %s226 = sphi 0, %s228
      %s229 = sphi 0, %s226
      %s230 = sphi 0, %s229
      %s246 = sphi 0, %s230
    $region4: #{tpu_custom_call.1} parent=1 // loop_header_branch
      %23 = sbr.rel (%p21) target = $region8
    $region5: #{tpu_custom_call.1} parent=1 // loop_body
      %s25 = ssub.s32 %s20, 1
      %s26 = ssub.s32 %s20, 2
      %s33 = sadd.s32 1, %s28
      %p34 = scmp.ge.s32.totalorder %s33, 1
      %s35 = scalar_select %p34, 0, %s33
      %s36 = sadd.s32 1, %s27
      %s37 = scalar_select %p34, %s36, %s27
      %p38 = scmp.ge.s32.totalorder %s37, 2
      %s39 = scalar_select %p38, 0, %s37
      %s40 = ssub.s32 %s27, %s39
      %s41 = ssub.s32 %s28, %s35
      %s42 = sor.u32 %s40, %s41
      %p43 = scmp.eq.s32.totalorder %s42, 0
      %s45 = sadd.s32 %s44, 1
      %s46 = scalar_select %p43, %s44, %s45
      %p49 = pneg %p43
      %p50 = scmp.eq.s32.totalorder %s20, 1
      %p51 = por %p49, %p50
      %p52 = scmp.ne.s32.totalorder %s44, %s47
      %p53 = scmp.eq.s32.totalorder %s20, 0
      %p54 = por %p52, %p53
      %p55 = scmp.ne.s32.totalorder %s44, %s47
      %p56 = scmp.eq.s32.totalorder %s25, 1
      %p57 = por %p55, %p56
      %p58 = scmp.ne.s32.totalorder %s47, %s48
      %p59 = scmp.eq.s32.totalorder %s25, 0
      %p60 = por %p58, %p59
      %p61 = scmp.ne.s32.totalorder %s47, %s48
      %p62 = scmp.eq.s32.totalorder %s26, 1
      %p63 = por %p61, %p62
      %p65 = scmp.ne.s32.totalorder %s48, %s64
      %p66 = scmp.eq.s32.totalorder %s26, 0
      %p67 = por %p65, %p66
      %s68 = ssub.s32 %s27, %s39
      %s69 = ssub.s32 %s28, %s35
      %s70 = sor.u32 %s68, %s69
      %p71 = scmp.eq.s32.totalorder %s70, 0
      %s73 = sadd.s32 %s72, 1
      %s74 = scalar_select %p71, %s72, %s73
      %p77 = pneg %p71
      %p78 = scmp.eq.s32.totalorder %s20, 1
      %p79 = por %p77, %p78
      %p80 = scmp.ne.s32.totalorder %s72, %s75
      %p81 = scmp.eq.s32.totalorder %s20, 0
      %p82 = por %p80, %p81
      %p83 = scmp.ne.s32.totalorder %s72, %s75
      %p84 = scmp.eq.s32.totalorder %s25, 1
      %p85 = por %p83, %p84
      %p86 = scmp.ne.s32.totalorder %s75, %s76
      %p87 = scmp.eq.s32.totalorder %s25, 0
      %p88 = por %p86, %p87
      %p89 = scmp.ne.s32.totalorder %s75, %s76
      %p90 = scmp.eq.s32.totalorder %s26, 1
      %p91 = por %p89, %p90
      %p93 = scmp.ne.s32.totalorder %s76, %s92
      %p94 = scmp.eq.s32.totalorder %s26, 0
      %p95 = por %p93, %p94
      %s97 = sadd.s32 %s96, 1
      %p100 = scmp.eq.s32.totalorder %s20, 1
      %p101 = scmp.ne.s32.totalorder %s96, %s98
      %p102 = scmp.eq.s32.totalorder %s20, 0
      %p103 = por %p101, %p102
      %p104 = scmp.ne.s32.totalorder %s96, %s98
      %p105 = scmp.eq.s32.totalorder %s25, 1
      %p106 = por %p104, %p105
      %p107 = scmp.ne.s32.totalorder %s98, %s99
      %p108 = scmp.eq.s32.totalorder %s25, 0
      %p109 = por %p107, %p108
      %p110 = scmp.ne.s32.totalorder %s98, %s99
      %p111 = scmp.eq.s32.totalorder %s26, 1
      %p112 = por %p110, %p111
      %p114 = scmp.ne.s32.totalorder %s99, %s113
      %p115 = scmp.eq.s32.totalorder %s26, 0
      %p116 = por %p114, %p115
      %s118 = sadd.s32 %s117, 1
      %p121 = scmp.eq.s32.totalorder %s20, 1
      %p122 = scmp.ne.s32.totalorder %s117, %s119
      %p123 = scmp.eq.s32.totalorder %s20, 0
      %p124 = por %p122, %p123
      %p125 = scmp.ne.s32.totalorder %s117, %s119
      %p126 = scmp.eq.s32.totalorder %s25, 1
      %p127 = por %p125, %p126
      %p128 = scmp.ne.s32.totalorder %s119, %s120
      %p129 = scmp.eq.s32.totalorder %s25, 0
      %p130 = por %p128, %p129
      %p131 = scmp.ne.s32.totalorder %s119, %s120
      %p132 = scmp.eq.s32.totalorder %s26, 1
      %p133 = por %p131, %p132
      %p135 = scmp.ne.s32.totalorder %s120, %s134
      %p136 = scmp.eq.s32.totalorder %s26, 0
      %p137 = por %p135, %p136
      %s138 = ssub.s32 %s27, %s39
      %s139 = ssub.s32 %s28, %s35
      %s140 = sor.u32 %s138, %s139
      %p141 = scmp.eq.s32.totalorder %s140, 0
      %s143 = sadd.s32 %s142, 1
      %s144 = scalar_select %p141, %s142, %s143
      %p147 = pneg %p141
      %p148 = scmp.eq.s32.totalorder %s20, 1
      %p149 = por %p147, %p148
      %p150 = scmp.ne.s32.totalorder %s142, %s145
      %p151 = scmp.eq.s32.totalorder %s20, 0
      %p152 = por %p150, %p151
      %p153 = scmp.ne.s32.totalorder %s142, %s145
      %p154 = scmp.eq.s32.totalorder %s25, 1
      %p155 = por %p153, %p154
      %p156 = scmp.ne.s32.totalorder %s145, %s146
      %p157 = scmp.eq.s32.totalorder %s25, 0
      %p158 = por %p156, %p157
      %p159 = scmp.ne.s32.totalorder %s145, %s146
      %p160 = scmp.eq.s32.totalorder %s26, 1
      %p161 = por %p159, %p160
      %p163 = scmp.ne.s32.totalorder %s146, %s162
      %p164 = scmp.eq.s32.totalorder %s26, 0
      %p165 = por %p163, %p164
      %s166 = ssub.s32 %s27, %s39
      %s167 = ssub.s32 %s28, %s35
      %s168 = sor.u32 %s166, %s167
      %p169 = scmp.eq.s32.totalorder %s168, 0
      %s171 = sadd.s32 %s170, 1
      %s172 = scalar_select %p169, %s170, %s171
      %p175 = pneg %p169
      %p176 = scmp.eq.s32.totalorder %s20, 1
      %p177 = por %p175, %p176
      %p178 = scmp.ne.s32.totalorder %s170, %s173
      %p179 = scmp.eq.s32.totalorder %s20, 0
      %p180 = por %p178, %p179
      %p181 = scmp.ne.s32.totalorder %s170, %s173
      %p182 = scmp.eq.s32.totalorder %s25, 1
      %p183 = por %p181, %p182
      %p184 = scmp.ne.s32.totalorder %s173, %s174
      %p185 = scmp.eq.s32.totalorder %s25, 0
      %p186 = por %p184, %p185
      %p187 = scmp.ne.s32.totalorder %s173, %s174
      %p188 = scmp.eq.s32.totalorder %s26, 1
      %p189 = por %p187, %p188
      %p191 = scmp.ne.s32.totalorder %s174, %s190
      %p192 = scmp.eq.s32.totalorder %s26, 0
      %p193 = por %p191, %p192
      %s194 = ssub.s32 %s27, %s39
      %s195 = ssub.s32 %s28, %s35
      %s196 = sor.u32 %s194, %s195
      %p197 = scmp.eq.s32.totalorder %s196, 0
      %s199 = sadd.s32 %s198, 1
      %s200 = scalar_select %p197, %s198, %s199
      %p203 = pneg %p197
      %p204 = scmp.eq.s32.totalorder %s20, 1
      %p205 = por %p203, %p204
      %p206 = scmp.ne.s32.totalorder %s198, %s201
      %p207 = scmp.eq.s32.totalorder %s20, 0
      %p208 = por %p206, %p207
      %p209 = scmp.ne.s32.totalorder %s198, %s201
      %p210 = scmp.eq.s32.totalorder %s25, 1
      %p211 = por %p209, %p210
      %p212 = scmp.ne.s32.totalorder %s201, %s202
      %p213 = scmp.eq.s32.totalorder %s25, 0
      %p214 = por %p212, %p213
      %p215 = scmp.ne.s32.totalorder %s201, %s202
      %p216 = scmp.eq.s32.totalorder %s26, 1
      %p217 = por %p215, %p216
      %p219 = scmp.ne.s32.totalorder %s202, %s218
      %p220 = scmp.eq.s32.totalorder %s26, 0
      %p221 = por %p219, %p220
      %s222 = ssub.s32 %s27, %s39
      %s223 = ssub.s32 %s28, %s35
      %s224 = sor.u32 %s222, %s223
      %p225 = scmp.eq.s32.totalorder %s224, 0
      %s227 = sadd.s32 %s226, 1
      %s228 = scalar_select %p225, %s226, %s227
      %p231 = pneg %p225
      %p232 = scmp.eq.s32.totalorder %s20, 1
      %p233 = por %p231, %p232
      %p234 = scmp.ne.s32.totalorder %s226, %s229
      %p235 = scmp.eq.s32.totalorder %s20, 0
      %p236 = por %p234, %p235
      %p237 = scmp.ne.s32.totalorder %s226, %s229
      %p238 = scmp.eq.s32.totalorder %s25, 1
      %p239 = por %p237, %p238
      %p240 = scmp.ne.s32.totalorder %s229, %s230
      %p241 = scmp.eq.s32.totalorder %s25, 0
      %p242 = por %p240, %p241
      %p243 = scmp.ne.s32.totalorder %s229, %s230
      %p244 = scmp.eq.s32.totalorder %s26, 1
      %p245 = por %p243, %p244
      %p247 = scmp.ne.s32.totalorder %s230, %s246
      %p248 = scmp.eq.s32.totalorder %s26, 0
      %p249 = por %p247, %p248
      %p250 = scmp.le.s32.totalorder 1, %s20
      %p251 = scmp.lt.s32.totalorder %s20, 3
      %p252 = pnand %p250, %p251
      %p253 = pneg %p252
      // Predicated region
      $region9: #{tpu_custom_call.1} parent=5 // pred_check
        _
      $region10: #{tpu_custom_call.1} parent=5 // pred_check_branch
        %255 = sbr.rel (%p252) target = $region12
      $region11: #{tpu_custom_call.1} parent=5 // pred_region
        %s256 = ssub.s32 %s20, 1
        // Predicated region
        $region13: #{tpu_custom_call.1} parent=11 // pred_check
          %p257 = pneg %p109
        $region14: #{tpu_custom_call.1} parent=11 // pred_check_branch
          %259 = sbr.rel (%p257) target = $region16
        $region15: #{tpu_custom_call.1} parent=11 // pred_region
          _
        $region16: #{tpu_custom_call.1} parent=11 // pred_fallthru
          _
        // Predicated region
        $region17: #{tpu_custom_call.1} parent=11 // pred_check
          %p260 = pneg %p130
        $region18: #{tpu_custom_call.1} parent=11 // pred_check_branch
          %262 = sbr.rel (%p260) target = $region20
        $region19: #{tpu_custom_call.1} parent=11 // pred_region
          _
        $region20: #{tpu_custom_call.1} parent=11 // pred_fallthru
          _
      $region12: #{tpu_custom_call.1} parent=5 // pred_fallthru
        _
      %p263 = scmp.lt.s32.totalorder %s20, 2
      // Predicated region
      $region21: #{tpu_custom_call.1} parent=5 // pred_check
        %p264 = pneg %p263
      $region22: #{tpu_custom_call.1} parent=5 // pred_check_branch
        %266 = sbr.rel (%p264) target = $region24
      $region23: #{tpu_custom_call.1} parent=5 // pred_region
        // Predicated region
        $region25: #{tpu_custom_call.1} parent=23 // pred_check
          %p267 = pneg %p54
        $region26: #{tpu_custom_call.1} parent=23 // pred_check_branch
          %269 = sbr.rel (%p267) target = $region28
        $region27: #{tpu_custom_call.1} parent=23 // pred_region
          %s270 = sand.u32 %s44, 1
          %s271 = scalar_lea.sflag [#allocation3], %s270
          %s272 = sand.u32 %s44, 1
          %s273 = smul.addr %s272, 4
          %s274 = scalar_lea.vmem [#allocation2], %s273
          %s276 = ssub.s32 64, 64
          %277 = vsyncadd %s271, %s276
          %s278 = sadd.s32 %s28, %s27
          %s279 = smul.addr %s278, 64
          %s280 = scalar_lea.hbm %s0, %s279
          %s282 = sshll.u32 %s274, 4
          %s283 = int_to_ptr.vmem [resolvable:$true] %s282
          %285 = dma.hbm_to_vmem [thread:$0]  %s280, 64, %s283, %s271
        $region28: #{tpu_custom_call.1} parent=23 // pred_fallthru
          _
        // Predicated region
        $region29: #{tpu_custom_call.1} parent=23 // pred_check
          %p286 = pneg %p82
        $region30: #{tpu_custom_call.1} parent=23 // pred_check_branch
          %288 = sbr.rel (%p286) target = $region32
        $region31: #{tpu_custom_call.1} parent=23 // pred_region
          %s289 = sand.u32 %s72, 1
          %s290 = scalar_lea.sflag [#allocation5], %s289
          %s291 = sand.u32 %s72, 1
          %s292 = smul.addr %s291, 4
          %s293 = scalar_lea.vmem [#allocation4], %s292
          %s295 = ssub.s32 64, 64
          %296 = vsyncadd %s290, %s295
          %s297 = sadd.s32 %s28, %s27
          %s298 = smul.addr %s297, 64
          %s299 = scalar_lea.hbm %s1, %s298
          %s301 = sshll.u32 %s293, 4
          %s302 = int_to_ptr.vmem [resolvable:$true] %s301
          %304 = dma.hbm_to_vmem [thread:$0]  %s299, 64, %s302, %s290
        $region32: #{tpu_custom_call.1} parent=23 // pred_fallthru
          _
      $region24: #{tpu_custom_call.1} parent=5 // pred_fallthru
        _
      %p305 = scmp.le.s32.totalorder 1, %s20
      %p306 = scmp.lt.s32.totalorder %s20, 3
      %p307 = pnand %p305, %p306
      %p308 = pneg %p307
      // Predicated region
      $region33: #{tpu_custom_call.1} parent=5 // pred_check
        _
      $region34: #{tpu_custom_call.1} parent=5 // pred_check_branch
        %310 = sbr.rel (%p307) target = $region36
      $region35: #{tpu_custom_call.1} parent=5 // pred_region
        %s311 = ssub.s32 %s20, 1
        %s312 = sand.u32 %s47, 1
        %s313 = scalar_lea.sflag [#allocation3], %s312
        %s314 = sand.u32 %s47, 1
        %s315 = smul.addr %s314, 4
        %s316 = scalar_lea.vmem [#allocation2], %s315
        // Predicated region
        $region37: #{tpu_custom_call.1} parent=35 // pred_check
          %p317 = pneg %p60
        $region38: #{tpu_custom_call.1} parent=35 // pred_check_branch
          %319 = sbr.rel (%p317) target = $region40
        $region39: #{tpu_custom_call.1} parent=35 // pred_region
          %320 = dma.done %s313, 64
        $region40: #{tpu_custom_call.1} parent=35 // pred_fallthru
          _
        %s321 = sand.u32 %s75, 1
        %s322 = scalar_lea.sflag [#allocation5], %s321
        %s323 = sand.u32 %s75, 1
        %s324 = smul.addr %s323, 4
        %s325 = scalar_lea.vmem [#allocation4], %s324
        // Predicated region
        $region41: #{tpu_custom_call.1} parent=35 // pred_check
          %p326 = pneg %p88
        $region42: #{tpu_custom_call.1} parent=35 // pred_check_branch
          %328 = sbr.rel (%p326) target = $region44
        $region43: #{tpu_custom_call.1} parent=35 // pred_region
          %329 = dma.done %s322, 64
        $region44: #{tpu_custom_call.1} parent=35 // pred_fallthru
          _
        %s330 = sand.u32 %s47, 1
        %s331 = scalar_lea.sflag [#allocation3], %s330
        %s332 = sand.u32 %s47, 1
        %s333 = smul.addr %s332, 4
        %s334 = scalar_lea.vmem [#allocation2], %s333
        %p335 = pneg %p60
        %p336 = pneg %p57
        %s337 = sand.u32 %s75, 1
        %s338 = scalar_lea.sflag [#allocation5], %s337
        %s339 = sand.u32 %s75, 1
        %s340 = smul.addr %s339, 4
        %s341 = scalar_lea.vmem [#allocation4], %s340
        %p342 = pneg %p88
        %p343 = pneg %p85
        %p344 = pneg %p109
        %p345 = pneg %p106
        %p346 = pneg %p130
        %p347 = pneg %p127
        %p348 = pneg %p158
        %p349 = pneg %p155
        %p350 = scmp.lt.s32.totalorder %s29, 1
        %s351 = scalar_select %p350, %s29, 1
        %p352 = scmp.lt.s32.totalorder %s30, 0
        %s353 = scalar_select %p352, %s30, 0
        %s354 = sadd.s32 %s353, %s351
        %s355 = smul.addr %s354, 4
        %s356 = scalar_lea.vmem %s4, %s355
        %p357 = pneg %p186
        %p358 = pneg %p183
        %p359 = scmp.lt.s32.totalorder %s29, 1
        %s360 = scalar_select %p359, %s29, 1
        %p361 = scmp.lt.s32.totalorder %s30, 0
        %s362 = scalar_select %p361, %s30, 0
        %s363 = sadd.s32 %s362, %s360
        %s364 = smul.addr %s363, 4
        %s365 = scalar_lea.vmem %s5, %s364
        %p366 = pneg %p214
        %p367 = pneg %p211
        %p368 = scmp.lt.s32.totalorder %s29, 1
        %s369 = scalar_select %p368, %s29, 1
        %p370 = scmp.lt.s32.totalorder %s30, 0
        %s371 = scalar_select %p370, %s30, 0
        %s372 = sadd.s32 %s371, %s369
        %s373 = smul.addr %s372, 4
        %s374 = scalar_lea.vmem %s6, %s373
        %p375 = pneg %p242
        %p376 = pneg %p239
        %p377 = scmp.lt.s32.totalorder %s29, 1
        %s378 = scalar_select %p377, %s29, 1
        %p379 = scmp.lt.s32.totalorder %s30, 0
        %s380 = scalar_select %p379, %s30, 0
        %s381 = sadd.s32 %s380, %s378
        %s382 = smul.addr %s381, 4
        %s383 = scalar_lea.vmem %s7, %s382
        %p384 = scmp.lt.s32.totalorder %s29, 1
        %s385 = scalar_select %p384, %s29, 1
        %p386 = scmp.lt.s32.totalorder %s30, 0
        %s387 = scalar_select %p386, %s30, 0
        %s388 = sadd.s32 %s387, %s385
        %s389 = smul.addr %s388, 4
        %s390 = scalar_lea.vmem %s4, %s389
        %p391 = scmp.lt.s32.totalorder %s29, 1
        %s392 = scalar_select %p391, %s29, 1
        %p393 = scmp.lt.s32.totalorder %s30, 0
        %s394 = scalar_select %p393, %s30, 0
        %s395 = sadd.s32 %s394, %s392
        %s396 = smul.addr %s395, 4
        %s397 = scalar_lea.vmem %s5, %s396
        %p398 = scmp.lt.s32.totalorder %s29, 1
        %s399 = scalar_select %p398, %s29, 1
        %p400 = scmp.lt.s32.totalorder %s30, 0
        %s401 = scalar_select %p400, %s30, 0
        %s402 = sadd.s32 %s401, %s399
        %s403 = smul.addr %s402, 4
        %s404 = scalar_lea.vmem %s6, %s403
        %p405 = scmp.lt.s32.totalorder %s29, 1
        %s406 = scalar_select %p405, %s29, 1
        %p407 = scmp.lt.s32.totalorder %s30, 0
        %s408 = scalar_select %p407, %s30, 0
        %s409 = sadd.s32 %s408, %s406
        %s410 = smul.addr %s409, 4
        %s411 = scalar_lea.vmem %s7, %s410
        %v412 = vld [vmem:[%s2] sm:$0xf]
        %v413 = vld [vmem:[%s3] sm:$0xf]
        %v414 = vld [vmem:[%s316] sm:$0xf]
        %v415 = vmax.f32 %v414, 0.0
        %v416 = vld [vmem:[%s325] sm:$0xf]
        %v417 = vmax.f32 %v416, 0.0
        %vm418 = vcmask 31744
        %v420 = vsel %vm418, %v412, 0
        %vm422 = vcmask 1043456
        %v424 = vsel %vm422, %v415, 0
        %426 = vmatprep.subr.mxu0 0.0
        %427 = vmatpush1.msra.mxu0 %v424
        %428 = vmatprep.subr.mxu0 0.0
        %429 = vmatpush1.msra.mxu0 0.0
        %430 = vmatprep.subr.mxu0 0.0
        %431 = vmatpush1.msra.mxu0 0.0
        %432 = vmatprep.subr.mxu0 0.0
        %433 = vmatpush1.msra.mxu0 0.0
        %434 = vmatprep.subr.mxu0 0.0
        %435 = vmatpush1.msra.mxu0 0.0
        %436 = vmatprep.subr.mxu0 0.0
        %437 = vmatpush1.msra.mxu0 0.0
        %438 = vmatprep.subr.mxu0 0.0
        %439 = vmatpush1.msra.mxu0 0.0
        %440 = vmatprep.subr.mxu0 0.0
        %441 = vmatpush1.msra.mxu0 0.0
        %442 = vmatprep.subr.mxu0 0.0
        %443 = vmatpush1.msra.mxu0 0.0
        %444 = vmatprep.subr.mxu0 0.0
        %445 = vmatpush1.msra.mxu0 0.0
        %446 = vmatprep.subr.mxu0 0.0
        %447 = vmatpush1.msra.mxu0 0.0
        %448 = vmatprep.subr.mxu0 0.0
        %449 = vmatpush1.msra.mxu0 0.0
        %450 = vmatprep.subr.mxu0 0.0
        %451 = vmatpush1.msra.mxu0 0.0
        %452 = vmatprep.subr.mxu0 0.0
        %453 = vmatpush1.msra.mxu0 0.0
        %454 = vmatprep.subr.mxu0 0.0
        %455 = vmatpush1.msra.mxu0 0.0
        %456 = vmatprep.subr.mxu0 0.0
        %457 = vmatpush1.msra.mxu0 0.0
        %458 = vmatprep.subr.mxu0 0.0
        %459 = vmatpush1.msra.mxu0 0.0
        %460 = vmatprep.subr.mxu0 0.0
        %461 = vmatpush1.msra.mxu0 0.0
        %462 = vmatprep.subr.mxu0 0.0
        %463 = vmatpush1.msra.mxu0 0.0
        %464 = vmatprep.subr.mxu0 0.0
        %465 = vmatpush1.msra.mxu0 0.0
        %466 = vmatprep.subr.mxu0 0.0
        %467 = vmatpush1.msra.mxu0 0.0
        %468 = vmatprep.subr.mxu0 0.0
        %469 = vmatpush1.msra.mxu0 0.0
        %470 = vmatprep.subr.mxu0 0.0
        %471 = vmatpush1.msra.mxu0 0.0
        %472 = vmatprep.subr.mxu0 0.0
        %473 = vmatpush1.msra.mxu0 0.0
        %474 = vmatprep.subr.mxu0 0.0
        %475 = vmatpush1.msra.mxu0 0.0
        %476 = vmatprep.subr.mxu0 0.0
        %477 = vmatpush1.msra.mxu0 0.0
        %478 = vmatprep.subr.mxu0 0.0
        %479 = vmatpush1.msra.mxu0 0.0
        %480 = vmatprep.subr.mxu0 0.0
        %481 = vmatpush1.msra.mxu0 0.0
        %482 = vmatprep.subr.mxu0 0.0
        %483 = vmatpush1.msra.mxu0 0.0
        %484 = vmatprep.subr.mxu0 0.0
        %485 = vmatpush1.msra.mxu0 0.0
        %486 = vmatprep.subr.mxu0 0.0
        %487 = vmatpush1.msra.mxu0 0.0
        %488 = vmatprep.subr.mxu0 0.0
        %489 = vmatpush1.msra.mxu0 0.0
        %490 = vmatprep.mubr.f32.mxu0 0.0
        %491 = vmatmul.mubr.f32.gmra.mrb[0].mxu0 %v420
        %v492 = vpop.f32.mrb[0].mxu0
        %v493 = vadd.f32 0.0, %v492
        %v494 = vpop.f32.mrb[0].mxu0
        %495 = vdwg.mxu0
        %v497 = vsel %vm418, %v413, 0
        %v500 = vsel %vm422, %v417, 0
        %502 = vmatprep.subr.mxu0 0.0
        %503 = vmatpush1.msra.mxu0 %v500
        %504 = vmatprep.subr.mxu0 0.0
        %505 = vmatpush1.msra.mxu0 0.0
        %506 = vmatprep.subr.mxu0 0.0
        %507 = vmatpush1.msra.mxu0 0.0
        %508 = vmatprep.subr.mxu0 0.0
        %509 = vmatpush1.msra.mxu0 0.0
        %510 = vmatprep.subr.mxu0 0.0
        %511 = vmatpush1.msra.mxu0 0.0
        %512 = vmatprep.subr.mxu0 0.0
        %513 = vmatpush1.msra.mxu0 0.0
        %514 = vmatprep.subr.mxu0 0.0
        %515 = vmatpush1.msra.mxu0 0.0
        %516 = vmatprep.subr.mxu0 0.0
        %517 = vmatpush1.msra.mxu0 0.0
        %518 = vmatprep.subr.mxu0 0.0
        %519 = vmatpush1.msra.mxu0 0.0
        %520 = vmatprep.subr.mxu0 0.0
        %521 = vmatpush1.msra.mxu0 0.0
        %522 = vmatprep.subr.mxu0 0.0
        %523 = vmatpush1.msra.mxu0 0.0
        %524 = vmatprep.subr.mxu0 0.0
        %525 = vmatpush1.msra.mxu0 0.0
        %526 = vmatprep.subr.mxu0 0.0
        %527 = vmatpush1.msra.mxu0 0.0
        %528 = vmatprep.subr.mxu0 0.0
        %529 = vmatpush1.msra.mxu0 0.0
        %530 = vmatprep.subr.mxu0 0.0
        %531 = vmatpush1.msra.mxu0 0.0
        %532 = vmatprep.subr.mxu0 0.0
        %533 = vmatpush1.msra.mxu0 0.0
        %534 = vmatprep.subr.mxu0 0.0
        %535 = vmatpush1.msra.mxu0 0.0
        %536 = vmatprep.subr.mxu0 0.0
        %537 = vmatpush1.msra.mxu0 0.0
        %538 = vmatprep.subr.mxu0 0.0
        %539 = vmatpush1.msra.mxu0 0.0
        %540 = vmatprep.subr.mxu0 0.0
        %541 = vmatpush1.msra.mxu0 0.0
        %542 = vmatprep.subr.mxu0 0.0
        %543 = vmatpush1.msra.mxu0 0.0
        %544 = vmatprep.subr.mxu0 0.0
        %545 = vmatpush1.msra.mxu0 0.0
        %546 = vmatprep.subr.mxu0 0.0
        %547 = vmatpush1.msra.mxu0 0.0
        %548 = vmatprep.subr.mxu0 0.0
        %549 = vmatpush1.msra.mxu0 0.0
        %550 = vmatprep.subr.mxu0 0.0
        %551 = vmatpush1.msra.mxu0 0.0
        %552 = vmatprep.subr.mxu0 0.0
        %553 = vmatpush1.msra.mxu0 0.0
        %554 = vmatprep.subr.mxu0 0.0
        %555 = vmatpush1.msra.mxu0 0.0
        %556 = vmatprep.subr.mxu0 0.0
        %557 = vmatpush1.msra.mxu0 0.0
        %558 = vmatprep.subr.mxu0 0.0
        %559 = vmatpush1.msra.mxu0 0.0
        %560 = vmatprep.subr.mxu0 0.0
        %561 = vmatpush1.msra.mxu0 0.0
        %562 = vmatprep.subr.mxu0 0.0
        %563 = vmatpush1.msra.mxu0 0.0
        %564 = vmatprep.subr.mxu0 0.0
        %565 = vmatpush1.msra.mxu0 0.0
        %566 = vmatprep.mubr.f32.mxu0 0.0
        %567 = vmatmul.mubr.f32.gmra.mrb[0].mxu0 %v497
        %v568 = vpop.f32.mrb[0].mxu0
        %v569 = vadd.f32 0.0, %v568
        %v570 = vpop.f32.mrb[0].mxu0
        %571 = vdwg.mxu0
        %vm572 = vcmask 519168
        %v573 = vsel %vm572, %v493, 0.0
        %574 = vadd.xlane.f32.xlu0 %v573
        %v575 = vpop.xlane.xlu0 %574
        %v576 = vadd.f32 %v575, 0.0
        %v577 = vmul.f32 %v493, %v493
        %v578 = vsel %vm572, %v577, 0.0
        %579 = vadd.xlane.f32.xlu0 %v578
        %v580 = vpop.xlane.xlu0 %579
        %v581 = vadd.f32 %v580, 0.0
        %v582 = vsel %vm572, %v569, 0.0
        %583 = vadd.xlane.f32.xlu0 %v582
        %v584 = vpop.xlane.xlu0 %583
        %v585 = vadd.f32 %v584, 0.0
        %v586 = vmul.f32 %v569, %v569
        %v587 = vsel %vm572, %v586, 0.0
        %588 = vadd.xlane.f32.xlu0 %v587
        %v589 = vpop.xlane.xlu0 %588
        %v590 = vadd.f32 %v589, 0.0
        %vm591 = vcmask 3072
        %592 = vst.msk [vmem:[%s390] sm:$0xf] %vm591, %v576
        %593 = vst.msk [vmem:[%s397] sm:$0xf] %vm591, %v581
        %594 = vst.msk [vmem:[%s404] sm:$0xf] %vm591, %v585
        %595 = vst.msk [vmem:[%s411] sm:$0xf] %vm591, %v590
        %p596 = scmp.lt.s32.totalorder %s29, 1
        %s597 = scalar_select %p596, %s29, 1
        %p598 = scmp.lt.s32.totalorder %s30, 0
        %s599 = scalar_select %p598, %s30, 0
        %s600 = sadd.s32 %s599, %s597
        %s601 = smul.addr %s600, 4
        %s602 = scalar_lea.vmem %s4, %s601
        %p603 = scmp.lt.s32.totalorder %s29, 1
        %s604 = scalar_select %p603, %s29, 1
        %p605 = scmp.lt.s32.totalorder %s30, 0
        %s606 = scalar_select %p605, %s30, 0
        %s607 = sadd.s32 %s606, %s604
        %s608 = smul.addr %s607, 4
        %s609 = scalar_lea.vmem %s5, %s608
        %p610 = scmp.lt.s32.totalorder %s29, 1
        %s611 = scalar_select %p610, %s29, 1
        %p612 = scmp.lt.s32.totalorder %s30, 0
        %s613 = scalar_select %p612, %s30, 0
        %s614 = sadd.s32 %s613, %s611
        %s615 = smul.addr %s614, 4
        %s616 = scalar_lea.vmem %s6, %s615
        %p617 = scmp.lt.s32.totalorder %s29, 1
        %s618 = scalar_select %p617, %s29, 1
        %p619 = scmp.lt.s32.totalorder %s30, 0
        %s620 = scalar_select %p619, %s30, 0
        %s621 = sadd.s32 %s620, %s618
        %s622 = smul.addr %s621, 4
        %s623 = scalar_lea.vmem %s7, %s622
        // Predicated region
        $region45: #{tpu_custom_call.1} parent=35 // pred_check
          %p624 = pneg %p155
        $region46: #{tpu_custom_call.1} parent=35 // pred_check_branch
          %626 = sbr.rel (%p624) target = $region48
        $region47: #{tpu_custom_call.1} parent=35 // pred_region
          _
        $region48: #{tpu_custom_call.1} parent=35 // pred_fallthru
          _
        // Predicated region
        $region49: #{tpu_custom_call.1} parent=35 // pred_check
          %p627 = pneg %p183
        $region50: #{tpu_custom_call.1} parent=35 // pred_check_branch
          %629 = sbr.rel (%p627) target = $region52
        $region51: #{tpu_custom_call.1} parent=35 // pred_region
          _
        $region52: #{tpu_custom_call.1} parent=35 // pred_fallthru
          _
        // Predicated region
        $region53: #{tpu_custom_call.1} parent=35 // pred_check
          %p630 = pneg %p211
        $region54: #{tpu_custom_call.1} parent=35 // pred_check_branch
          %632 = sbr.rel (%p630) target = $region56
        $region55: #{tpu_custom_call.1} parent=35 // pred_region
          _
        $region56: #{tpu_custom_call.1} parent=35 // pred_fallthru
          _
        // Predicated region
        $region57: #{tpu_custom_call.1} parent=35 // pred_check
          %p633 = pneg %p239
        $region58: #{tpu_custom_call.1} parent=35 // pred_check_branch
          %635 = sbr.rel (%p633) target = $region60
        $region59: #{tpu_custom_call.1} parent=35 // pred_region
          _
        $region60: #{tpu_custom_call.1} parent=35 // pred_fallthru
          _
      $region36: #{tpu_custom_call.1} parent=5 // pred_fallthru
        _
      %p636 = scmp.le.s32.totalorder 2, %s20
      // Predicated region
      $region61: #{tpu_custom_call.1} parent=5 // pred_check
        %p637 = pneg %p636
      $region62: #{tpu_custom_call.1} parent=5 // pred_check_branch
        %639 = sbr.rel (%p637) target = $region64
      $region63: #{tpu_custom_call.1} parent=5 // pred_region
        %s640 = ssub.s32 %s20, 2
        // Predicated region
        $region65: #{tpu_custom_call.1} parent=63 // pred_check
          %p641 = pneg %p161
        $region66: #{tpu_custom_call.1} parent=63 // pred_check_branch
          %643 = sbr.rel (%p641) target = $region68
        $region67: #{tpu_custom_call.1} parent=63 // pred_region
          %p644 = scmp.lt.s32.totalorder %s31, 1
          %s645 = scalar_select %p644, %s31, 1
          %p646 = scmp.lt.s32.totalorder %s32, 0
          %s647 = scalar_select %p646, %s32, 0
          %s648 = sadd.s32 %s647, %s645
          %s649 = smul.addr %s648, 4
          %s650 = scalar_lea.vmem %s4, %s649
        $region68: #{tpu_custom_call.1} parent=63 // pred_fallthru
          _
        // Predicated region
        $region69: #{tpu_custom_call.1} parent=63 // pred_check
          %p651 = pneg %p189
        $region70: #{tpu_custom_call.1} parent=63 // pred_check_branch
          %653 = sbr.rel (%p651) target = $region72
        $region71: #{tpu_custom_call.1} parent=63 // pred_region
          %p654 = scmp.lt.s32.totalorder %s31, 1
          %s655 = scalar_select %p654, %s31, 1
          %p656 = scmp.lt.s32.totalorder %s32, 0
          %s657 = scalar_select %p656, %s32, 0
          %s658 = sadd.s32 %s657, %s655
          %s659 = smul.addr %s658, 4
          %s660 = scalar_lea.vmem %s5, %s659
        $region72: #{tpu_custom_call.1} parent=63 // pred_fallthru
          _
        // Predicated region
        $region73: #{tpu_custom_call.1} parent=63 // pred_check
          %p661 = pneg %p217
        $region74: #{tpu_custom_call.1} parent=63 // pred_check_branch
          %663 = sbr.rel (%p661) target = $region76
        $region75: #{tpu_custom_call.1} parent=63 // pred_region
          %p664 = scmp.lt.s32.totalorder %s31, 1
          %s665 = scalar_select %p664, %s31, 1
          %p666 = scmp.lt.s32.totalorder %s32, 0
          %s667 = scalar_select %p666, %s32, 0
          %s668 = sadd.s32 %s667, %s665
          %s669 = smul.addr %s668, 4
          %s670 = scalar_lea.vmem %s6, %s669
        $region76: #{tpu_custom_call.1} parent=63 // pred_fallthru
          _
        // Predicated region
        $region77: #{tpu_custom_call.1} parent=63 // pred_check
          %p671 = pneg %p245
        $region78: #{tpu_custom_call.1} parent=63 // pred_check_branch
          %673 = sbr.rel (%p671) target = $region80
        $region79: #{tpu_custom_call.1} parent=63 // pred_region
          %p674 = scmp.lt.s32.totalorder %s31, 1
          %s675 = scalar_select %p674, %s31, 1
          %p676 = scmp.lt.s32.totalorder %s32, 0
          %s677 = scalar_select %p676, %s32, 0
          %s678 = sadd.s32 %s677, %s675
          %s679 = smul.addr %s678, 4
          %s680 = scalar_lea.vmem %s7, %s679
        $region80: #{tpu_custom_call.1} parent=63 // pred_fallthru
          _
      $region64: #{tpu_custom_call.1} parent=5 // pred_fallthru
        _
    $region6: #{tpu_custom_call.1} parent=1 // loop_footer
      %s24 = sadd.s32 1, %s20
    $region7: #{tpu_custom_call.1} parent=1 // loop_footer_branch
      %19 = sbr.rel target = $region3
    $region8: #{tpu_custom_call.1} parent=1 // loop_exit
      _
    %681 = vsyncpa [#allocation3], 1
    %s682 = scalar_lea.sflag [#allocation3], 1
    %683 = vsyncpa %s682, 1
    %684 = vsyncpa [#allocation5], 1
    %s685 = scalar_lea.sflag [#allocation5], 1
    %686 = vsyncpa %s685, 1

</llo_original>
